<compile_context>
chip_gen: v5e
topology: v5e:2x2
jax: 0.10.0
libtpu: 0.0.40
codegen_flags: <defaults>
</compile_context>

<pallas_src>
import functools

import jax
import jax.numpy as jnp
from jax import lax
from jax.experimental import pallas as pl
from jax.experimental.pallas import tpu as pltpu


def _bce_with_logits_partial(sim, y, valid):
    """Stable BCE-with-logits, masked, reduced over the tile -> [1, 1]."""
    per = jnp.maximum(sim, 0.0) - sim * y + jnp.log1p(jnp.exp(-jnp.abs(sim)))
    per = jnp.where(valid, per, 0.0)
    return jnp.sum(per, axis=0, keepdims=True)


# --------------------------------------------------------------------------
# Path 1: small table, fully VMEM-resident; in-kernel row gather.
# --------------------------------------------------------------------------
def _skipgram_resident_kernel(c_idx_ref, t_idx_ref,   # SMEM int32[Bp] (scalar prefetch)
                              label_ref,              # VMEM f32[TB, 1]
                              emb_ref,                # VMEM [V, E] resident table
                              out_ref,                # VMEM f32[1, 1]
                              gc_ref, gt_ref,         # VMEM [TB, E] gather scratch
                              acc_ref,                # VMEM f32[1, 1] partial sum
                              *, tb, batch):
    step = pl.program_id(0)
    nsteps = pl.num_programs(0)

    @pl.when(step == 0)
    def _init():
        acc_ref[...] = jnp.zeros_like(acc_ref)

    base = step * tb
    # Gather TB (center, target) rows from the resident table into sublane/lane
    # dense [TB, E] scratch tiles (dynamic row read, static store offset).
    for j in range(tb):
        c = c_idx_ref[base + j]
        t = t_idx_ref[base + j]
        gc_ref[pl.ds(j, 1), :] = emb_ref[pl.ds(c, 1), :]
        gt_ref[pl.ds(j, 1), :] = emb_ref[pl.ds(t, 1), :]

    c_rows = gc_ref[...].astype(jnp.float32)                 # [TB, E]
    t_rows = gt_ref[...].astype(jnp.float32)
    sim = jnp.sum(c_rows * t_rows, axis=1, keepdims=True)    # [TB, 1]
    y = label_ref[...]                                       # [TB, 1]
    rows = lax.broadcasted_iota(jnp.int32, (tb, 1), 0) + base
    acc_ref[...] += _bce_with_logits_partial(sim, y, rows < batch)

    @pl.when(step == nsteps - 1)
    def _finalize():
        out_ref[...] = acc_ref[...]


# --------------------------------------------------------------------------
# Path 2: large table, stays in HBM; manual double-buffered row-gather DMA.
# --------------------------------------------------------------------------
def _skipgram_gather_kernel(c_idx_ref, t_idx_ref,     # SMEM int32[Bp] (scalar prefetch)
                            label_ref,                # VMEM f32[TB, 1]
                            emb_hbm,                  # ANY (HBM) [V, E]
                            out_ref,                  # VMEM f32[1, 1]
                            cbuf, tbuf,               # VMEM [2, TB, E] double buffers
                            sem,                      # DMA sems [2 slots, 2 streams]
                            acc_ref,                  # VMEM f32[1, 1] partial sum
                            *, tb, batch):
    step = pl.program_id(0)
    nsteps = pl.num_programs(0)
    slot = step % 2

    def start_fetch(s, dst_slot):
        base = s * tb
        for j in range(tb):
            c = c_idx_ref[base + j]
            t = t_idx_ref[base + j]
            pltpu.make_async_copy(emb_hbm.at[pl.ds(c, 1), :],
                                  cbuf.at[dst_slot, pl.ds(j, 1), :],
                                  sem.at[dst_slot, 0]).start()
            pltpu.make_async_copy(emb_hbm.at[pl.ds(t, 1), :],
                                  tbuf.at[dst_slot, pl.ds(j, 1), :],
                                  sem.at[dst_slot, 1]).start()

    @pl.when(step == 0)
    def _init():
        acc_ref[...] = jnp.zeros_like(acc_ref)
        start_fetch(0, 0)                       # prime slot 0

    @pl.when(step + 1 < nsteps)
    def _prefetch_next():
        start_fetch(step + 1, 1 - slot)         # overlaps with this step's compute

    # Wait for all 2*TB row DMAs of the current slot (each stream's TB copies
    # signal one shared semaphore; one wait per identically-sized copy).
    for j in range(tb):
        pltpu.make_async_copy(emb_hbm.at[pl.ds(0, 1), :],
                              cbuf.at[slot, pl.ds(j, 1), :],
                              sem.at[slot, 0]).wait()
        pltpu.make_async_copy(emb_hbm.at[pl.ds(0, 1), :],
                              tbuf.at[slot, pl.ds(j, 1), :],
                              sem.at[slot, 1]).wait()

    c_rows = cbuf[slot].astype(jnp.float32)                  # [TB, E]
    t_rows = tbuf[slot].astype(jnp.float32)
    sim = jnp.sum(c_rows * t_rows, axis=1, keepdims=True)    # [TB, 1]
    y = label_ref[...]
    rows = lax.broadcasted_iota(jnp.int32, (tb, 1), 0) + step * tb
    acc_ref[...] += _bce_with_logits_partial(sim, y, rows < batch)

    @pl.when(step == nsteps - 1)
    def _finalize():
        out_ref[...] = acc_ref[...]


# --------------------------------------------------------------------------
# Wrapper / dispatch
# --------------------------------------------------------------------------
def _round_up(x, m):
    return ((x + m - 1) // m) * m


def _vmem_capacity_bytes():
    try:
        return int(pltpu.get_tpu_info().vmem_capacity_bytes)
    except Exception:
        return 64 * 1024 * 1024   # conservative: v7x has the smallest VMEM


def skipgram_loss(center_idx, target_idx, label, emb, *, use_resident=None, tile_b=64):
    """sum BCE-with-logits( sum(emb[center] * emb[target], -1), label )."""
    B = int(center_idx.shape[0])
    V, E = map(int, emb.shape)

    TB = min(int(tile_b), _round_up(B, 8))      # batch rows per grid step (mult of 8)
    Bp = _round_up(B, TB)
    nsteps = Bp // TB
    pad = Bp - B

    c = jnp.pad(center_idx.reshape(B).astype(jnp.int32), (0, pad))
    t = jnp.pad(target_idx.reshape(B).astype(jnp.int32), (0, pad))
    y = jnp.pad(label.reshape(B).astype(jnp.float32), (0, pad)).reshape(Bp, 1)

    itemsize = emb.dtype.itemsize
    table_bytes = V * E * itemsize
    vmem_cap = _vmem_capacity_bytes()
    if use_resident is None:
        # Generation-aware residency threshold: (possibly double-buffered) table
        # + gather scratch + label blocks must fit comfortably in VMEM.
        working = 2 * table_bytes + 4 * TB * E * itemsize + (2 << 20)
        use_resident = working <= (vmem_cap * 3) // 4

    out_shape = jax.ShapeDtypeStruct((1, 1), jnp.float32)
    label_spec = pl.BlockSpec((TB, 1), lambda i, cr, tr: (i, 0))
    out_spec = pl.BlockSpec((1, 1), lambda i, cr, tr: (0, 0))
    dim_sems = ("arbitrary",)   # batch-tile axis reduces into a shared accumulator

    if use_resident:
        kernel = functools.partial(_skipgram_resident_kernel, tb=TB, batch=B)
        grid_spec = pltpu.PrefetchScalarGridSpec(
            num_scalar_prefetch=2,
            grid=(nsteps,),
            in_specs=[
                label_spec,
                pl.BlockSpec((V, E), lambda i, cr, tr: (0, 0)),   # resident table
            ],
            out_specs=out_spec,
            scratch_shapes=[
                pltpu.VMEM((TB, E), emb.dtype),
                pltpu.VMEM((TB, E), emb.dtype),
                pltpu.VMEM((1, 1), jnp.float32),
            ],
        )
        vmem_limit = min((vmem_cap * 3) // 4,
                         max(32 << 20, 2 * table_bytes + (8 << 20)))
        compiler_params = pltpu.CompilerParams(
            dimension_semantics=dim_sems,
            vmem_limit_bytes=int(vmem_limit),
        )
        bytes_accessed = table_bytes + Bp * 4 + 8
    else:
        kernel = functools.partial(_skipgram_gather_kernel, tb=TB, batch=B)
        grid_spec = pltpu.PrefetchScalarGridSpec(
            num_scalar_prefetch=2,
            grid=(nsteps,),
            in_specs=[
                label_spec,
                pl.BlockSpec(memory_space=pl.ANY),                # table stays in HBM
            ],
            out_specs=out_spec,
            scratch_shapes=[
                pltpu.VMEM((2, TB, E), emb.dtype),
                pltpu.VMEM((2, TB, E), emb.dtype),
                pltpu.SemaphoreType.DMA((2, 2)),
                pltpu.VMEM((1, 1), jnp.float32),
            ],
        )
        compiler_params = pltpu.CompilerParams(dimension_semantics=dim_sems)
        bytes_accessed = 2 * Bp * E * itemsize + Bp * 4 + 8

    out = pl.pallas_call(
        kernel,
        out_shape=out_shape,
        grid_spec=grid_spec,
        compiler_params=compiler_params,
        cost_estimate=pl.CostEstimate(
            flops=4 * Bp * E,
            transcendentals=2 * Bp,
            bytes_accessed=int(bytes_accessed),
        ),
    )(c, t, y, emb)
    return out[0, 0]


if __name__ == "__main__":
    # Small shapes consistent with the module (vocab, embedding, batch).
    V, E, B = 256, 128, 16

    key = jax.random.PRNGKey(0)
    k1, k2, k3, k4, k5 = jax.random.split(key, 5)

    # Deterministic init matching nn.init.uniform_(-r, r), r = (1/E)**0.5
    init_range = (1.0 / E) ** 0.5
    emb = jax.random.uniform(k1, (V, E), jnp.float32, -init_range, init_range)
    # out_embedding exists in __init__ but is unused in forward; kept for parity.
    out_emb = jax.random.uniform(k2, (V, E), jnp.float32, -init_range, init_range)  # noqa: F841

    center_idx = jax.random.randint(k3, (B,), 0, V, dtype=jnp.int32)
    target_idx = jax.random.randint(k4, (B,), 0, V, dtype=jnp.int32)
    label = jax.random.bernoulli(k5, 0.5, (B,)).astype(jnp.float32)

    # Pure-JAX reference (same math as F.binary_cross_entropy_with_logits, 'sum').
    c_e = emb[center_idx]
    t_e = emb[target_idx]
    sim = jnp.sum(c_e * t_e, axis=1)
    ref = jnp.sum(jnp.maximum(sim, 0.0) - sim * label + jnp.log1p(jnp.exp(-jnp.abs(sim))))

    # Fast path (default dispatch for these shapes): table resident in VMEM.
    loss_resident = skipgram_loss(center_idx, target_idx, label, emb)
    jax.block_until_ready(loss_resident)
    assert jnp.allclose(loss_resident, ref, rtol=1e-5, atol=1e-5), (
        float(loss_resident), float(ref))

    # Large-table path (forced here for coverage): double-buffered HBM row gather.
    loss_gather = skipgram_loss(center_idx, target_idx, label, emb, use_resident=False)
    jax.block_until_ready(loss_gather)
    assert jnp.allclose(loss_gather, ref, rtol=1e-5, atol=1e-5), (
        float(loss_gather), float(ref))

    print("KERNEL_OK")
</pallas_src>

<mosaic_0001>
module attributes {stable_mosaic.version = 11 : i64} {
  func.func @_skipgram_resident_kernel(%arg0: i32, %arg1: memref<16xi32, #tpu.memory_space<smem>>, %arg2: memref<16xi32, #tpu.memory_space<smem>>, %arg3: memref<16x1xf32, #tpu.memory_space<vmem>>, %arg4: memref<256x128xf32, #tpu.memory_space<vmem>>, %arg5: memref<1x1xf32, #tpu.memory_space<vmem>>, %arg6: memref<16x128xf32, #tpu.memory_space<vmem>>, %arg7: memref<16x128xf32, #tpu.memory_space<vmem>>, %arg8: memref<1x1xf32, #tpu.memory_space<vmem>>) attributes {dimension_semantics = [#tpu.dimension_semantics<arbitrary>], iteration_bounds = array<i64: 1>, scalar_prefetch = 2 : i64, scratch_operands = 3 : i64, tpu.core_type = #tpu.core_type<tc>, window_params = [{transform_indices = @transform_0, window_bounds = array<i64: 16, 1>}, {pipeline_mode = #tpu.pipeline_mode<synchronous>, transform_indices = @transform_1, window_bounds = array<i64: 256, 128>}, {pipeline_mode = #tpu.pipeline_mode<synchronous>, transform_indices = @transform_2, window_bounds = array<i64: 1, 1>}]} {
    %c0_i32 = arith.constant 0 : i32
    %0 = arith.cmpi eq, %arg0, %c0_i32 : i32
    %1 = arith.extui %0 : i1 to i32
    %c0_i32_0 = arith.constant 0 : i32
    %2 = arith.cmpi ne, %1, %c0_i32_0 : i32
    scf.if %2 {
      %cst_115 = arith.constant 0.000000e+00 : f32
      %227 = vector.broadcast %cst_115 : f32 to vector<1x1xf32>
      %c0_116 = arith.constant 0 : index
      %c0_117 = arith.constant 0 : index
      %228 = vector.load %arg8[%c0_116, %c0_117] : memref<1x1xf32, #tpu.memory_space<vmem>>, vector<1x1xf32>
      tpu.vector_store %arg8[%c0_116, %c0_117], %227 {strides = array<i32>} : memref<1x1xf32, #tpu.memory_space<vmem>>, vector<1x1xf32>,
    } else {
    }
    %c16_i32 = arith.constant 16 : i32
    %3 = arith.muli %arg0, %c16_i32 : i32
    %c0_i32_1 = arith.constant 0 : i32
    %4 = arith.addi %3, %c0_i32_1 : i32
    %5 = arith.index_cast %4 : i32 to index
    %6 = memref.load %arg1[%5] : memref<16xi32, #tpu.memory_space<smem>>
    %c0_i32_2 = arith.constant 0 : i32
    %7 = arith.addi %3, %c0_i32_2 : i32
    %8 = arith.index_cast %7 : i32 to index
    %9 = memref.load %arg2[%8] : memref<16xi32, #tpu.memory_space<smem>>
    %10 = arith.index_cast %6 : i32 to index
    %c0 = arith.constant 0 : index
    %11 = vector.load %arg4[%10, %c0] : memref<256x128xf32, #tpu.memory_space<vmem>>, vector<1x128xf32>
    %c0_3 = arith.constant 0 : index
    %c0_4 = arith.constant 0 : index
    %12 = vector.load %arg6[%c0_3, %c0_4] : memref<16x128xf32, #tpu.memory_space<vmem>>, vector<1x128xf32>
    tpu.vector_store %arg6[%c0_3, %c0_4], %11 {strides = array<i32>} : memref<16x128xf32, #tpu.memory_space<vmem>>, vector<1x128xf32>,
    %13 = arith.index_cast %9 : i32 to index
    %c0_5 = arith.constant 0 : index
    %14 = vector.load %arg4[%13, %c0_5] : memref<256x128xf32, #tpu.memory_space<vmem>>, vector<1x128xf32>
    %c0_6 = arith.constant 0 : index
    %c0_7 = arith.constant 0 : index
    %15 = vector.load %arg7[%c0_6, %c0_7] : memref<16x128xf32, #tpu.memory_space<vmem>>, vector<1x128xf32>
    tpu.vector_store %arg7[%c0_6, %c0_7], %14 {strides = array<i32>} : memref<16x128xf32, #tpu.memory_space<vmem>>, vector<1x128xf32>,
    %c1_i32 = arith.constant 1 : i32
    %16 = arith.addi %3, %c1_i32 : i32
    %17 = arith.index_cast %16 : i32 to index
    %18 = memref.load %arg1[%17] : memref<16xi32, #tpu.memory_space<smem>>
    %c1_i32_8 = arith.constant 1 : i32
    %19 = arith.addi %3, %c1_i32_8 : i32
    %20 = arith.index_cast %19 : i32 to index
    %21 = memref.load %arg2[%20] : memref<16xi32, #tpu.memory_space<smem>>
    %22 = arith.index_cast %18 : i32 to index
    %c0_9 = arith.constant 0 : index
    %23 = vector.load %arg4[%22, %c0_9] : memref<256x128xf32, #tpu.memory_space<vmem>>, vector<1x128xf32>
    %c1 = arith.constant 1 : index
    %c0_10 = arith.constant 0 : index
    %24 = vector.load %arg6[%c1, %c0_10] : memref<16x128xf32, #tpu.memory_space<vmem>>, vector<1x128xf32>
    tpu.vector_store %arg6[%c1, %c0_10], %23 {strides = array<i32>} : memref<16x128xf32, #tpu.memory_space<vmem>>, vector<1x128xf32>,
    %25 = arith.index_cast %21 : i32 to index
    %c0_11 = arith.constant 0 : index
    %26 = vector.load %arg4[%25, %c0_11] : memref<256x128xf32, #tpu.memory_space<vmem>>, vector<1x128xf32>
    %c1_12 = arith.constant 1 : index
    %c0_13 = arith.constant 0 : index
    %27 = vector.load %arg7[%c1_12, %c0_13] : memref<16x128xf32, #tpu.memory_space<vmem>>, vector<1x128xf32>
    tpu.vector_store %arg7[%c1_12, %c0_13], %26 {strides = array<i32>} : memref<16x128xf32, #tpu.memory_space<vmem>>, vector<1x128xf32>,
    %c2_i32 = arith.constant 2 : i32
    %28 = arith.addi %3, %c2_i32 : i32
    %29 = arith.index_cast %28 : i32 to index
    %30 = memref.load %arg1[%29] : memref<16xi32, #tpu.memory_space<smem>>
    %c2_i32_14 = arith.constant 2 : i32
    %31 = arith.addi %3, %c2_i32_14 : i32
    %32 = arith.index_cast %31 : i32 to index
    %33 = memref.load %arg2[%32] : memref<16xi32, #tpu.memory_space<smem>>
    %34 = arith.index_cast %30 : i32 to index
    %c0_15 = arith.constant 0 : index
    %35 = vector.load %arg4[%34, %c0_15] : memref<256x128xf32, #tpu.memory_space<vmem>>, vector<1x128xf32>
    %c2 = arith.constant 2 : index
    %c0_16 = arith.constant 0 : index
    %36 = vector.load %arg6[%c2, %c0_16] : memref<16x128xf32, #tpu.memory_space<vmem>>, vector<1x128xf32>
    tpu.vector_store %arg6[%c2, %c0_16], %35 {strides = array<i32>} : memref<16x128xf32, #tpu.memory_space<vmem>>, vector<1x128xf32>,
    %37 = arith.index_cast %33 : i32 to index
    %c0_17 = arith.constant 0 : index
    %38 = vector.load %arg4[%37, %c0_17] : memref<256x128xf32, #tpu.memory_space<vmem>>, vector<1x128xf32>
    %c2_18 = arith.constant 2 : index
    %c0_19 = arith.constant 0 : index
    %39 = vector.load %arg7[%c2_18, %c0_19] : memref<16x128xf32, #tpu.memory_space<vmem>>, vector<1x128xf32>
    tpu.vector_store %arg7[%c2_18, %c0_19], %38 {strides = array<i32>} : memref<16x128xf32, #tpu.memory_space<vmem>>, vector<1x128xf32>,
    %c3_i32 = arith.constant 3 : i32
    %40 = arith.addi %3, %c3_i32 : i32
    %41 = arith.index_cast %40 : i32 to index
    %42 = memref.load %arg1[%41] : memref<16xi32, #tpu.memory_space<smem>>
    %c3_i32_20 = arith.constant 3 : i32
    %43 = arith.addi %3, %c3_i32_20 : i32
    %44 = arith.index_cast %43 : i32 to index
    %45 = memref.load %arg2[%44] : memref<16xi32, #tpu.memory_space<smem>>
    %46 = arith.index_cast %42 : i32 to index
    %c0_21 = arith.constant 0 : index
    %47 = vector.load %arg4[%46, %c0_21] : memref<256x128xf32, #tpu.memory_space<vmem>>, vector<1x128xf32>
    %c3 = arith.constant 3 : index
    %c0_22 = arith.constant 0 : index
    %48 = vector.load %arg6[%c3, %c0_22] : memref<16x128xf32, #tpu.memory_space<vmem>>, vector<1x128xf32>
    tpu.vector_store %arg6[%c3, %c0_22], %47 {strides = array<i32>} : memref<16x128xf32, #tpu.memory_space<vmem>>, vector<1x128xf32>,
    %49 = arith.index_cast %45 : i32 to index
    %c0_23 = arith.constant 0 : index
    %50 = vector.load %arg4[%49, %c0_23] : memref<256x128xf32, #tpu.memory_space<vmem>>, vector<1x128xf32>
    %c3_24 = arith.constant 3 : index
    %c0_25 = arith.constant 0 : index
    %51 = vector.load %arg7[%c3_24, %c0_25] : memref<16x128xf32, #tpu.memory_space<vmem>>, vector<1x128xf32>
    tpu.vector_store %arg7[%c3_24, %c0_25], %50 {strides = array<i32>} : memref<16x128xf32, #tpu.memory_space<vmem>>, vector<1x128xf32>,
    %c4_i32 = arith.constant 4 : i32
    %52 = arith.addi %3, %c4_i32 : i32
    %53 = arith.index_cast %52 : i32 to index
    %54 = memref.load %arg1[%53] : memref<16xi32, #tpu.memory_space<smem>>
    %c4_i32_26 = arith.constant 4 : i32
    %55 = arith.addi %3, %c4_i32_26 : i32
    %56 = arith.index_cast %55 : i32 to index
    %57 = memref.load %arg2[%56] : memref<16xi32, #tpu.memory_space<smem>>
    %58 = arith.index_cast %54 : i32 to index
    %c0_27 = arith.constant 0 : index
    %59 = vector.load %arg4[%58, %c0_27] : memref<256x128xf32, #tpu.memory_space<vmem>>, vector<1x128xf32>
    %c4 = arith.constant 4 : index
    %c0_28 = arith.constant 0 : index
    %60 = vector.load %arg6[%c4, %c0_28] : memref<16x128xf32, #tpu.memory_space<vmem>>, vector<1x128xf32>
    tpu.vector_store %arg6[%c4, %c0_28], %59 {strides = array<i32>} : memref<16x128xf32, #tpu.memory_space<vmem>>, vector<1x128xf32>,
    %61 = arith.index_cast %57 : i32 to index
    %c0_29 = arith.constant 0 : index
    %62 = vector.load %arg4[%61, %c0_29] : memref<256x128xf32, #tpu.memory_space<vmem>>, vector<1x128xf32>
    %c4_30 = arith.constant 4 : index
    %c0_31 = arith.constant 0 : index
    %63 = vector.load %arg7[%c4_30, %c0_31] : memref<16x128xf32, #tpu.memory_space<vmem>>, vector<1x128xf32>
    tpu.vector_store %arg7[%c4_30, %c0_31], %62 {strides = array<i32>} : memref<16x128xf32, #tpu.memory_space<vmem>>, vector<1x128xf32>,
    %c5_i32 = arith.constant 5 : i32
    %64 = arith.addi %3, %c5_i32 : i32
    %65 = arith.index_cast %64 : i32 to index
    %66 = memref.load %arg1[%65] : memref<16xi32, #tpu.memory_space<smem>>
    %c5_i32_32 = arith.constant 5 : i32
    %67 = arith.addi %3, %c5_i32_32 : i32
    %68 = arith.index_cast %67 : i32 to index
    %69 = memref.load %arg2[%68] : memref<16xi32, #tpu.memory_space<smem>>
    %70 = arith.index_cast %66 : i32 to index
    %c0_33 = arith.constant 0 : index
    %71 = vector.load %arg4[%70, %c0_33] : memref<256x128xf32, #tpu.memory_space<vmem>>, vector<1x128xf32>
    %c5 = arith.constant 5 : index
    %c0_34 = arith.constant 0 : index
    %72 = vector.load %arg6[%c5, %c0_34] : memref<16x128xf32, #tpu.memory_space<vmem>>, vector<1x128xf32>
    tpu.vector_store %arg6[%c5, %c0_34], %71 {strides = array<i32>} : memref<16x128xf32, #tpu.memory_space<vmem>>, vector<1x128xf32>,
    %73 = arith.index_cast %69 : i32 to index
    %c0_35 = arith.constant 0 : index
    %74 = vector.load %arg4[%73, %c0_35] : memref<256x128xf32, #tpu.memory_space<vmem>>, vector<1x128xf32>
    %c5_36 = arith.constant 5 : index
    %c0_37 = arith.constant 0 : index
    %75 = vector.load %arg7[%c5_36, %c0_37] : memref<16x128xf32, #tpu.memory_space<vmem>>, vector<1x128xf32>
    tpu.vector_store %arg7[%c5_36, %c0_37], %74 {strides = array<i32>} : memref<16x128xf32, #tpu.memory_space<vmem>>, vector<1x128xf32>,
    %c6_i32 = arith.constant 6 : i32
    %76 = arith.addi %3, %c6_i32 : i32
    %77 = arith.index_cast %76 : i32 to index
    %78 = memref.load %arg1[%77] : memref<16xi32, #tpu.memory_space<smem>>
    %c6_i32_38 = arith.constant 6 : i32
    %79 = arith.addi %3, %c6_i32_38 : i32
    %80 = arith.index_cast %79 : i32 to index
    %81 = memref.load %arg2[%80] : memref<16xi32, #tpu.memory_space<smem>>
    %82 = arith.index_cast %78 : i32 to index
    %c0_39 = arith.constant 0 : index
    %83 = vector.load %arg4[%82, %c0_39] : memref<256x128xf32, #tpu.memory_space<vmem>>, vector<1x128xf32>
    %c6 = arith.constant 6 : index
    %c0_40 = arith.constant 0 : index
    %84 = vector.load %arg6[%c6, %c0_40] : memref<16x128xf32, #tpu.memory_space<vmem>>, vector<1x128xf32>
    tpu.vector_store %arg6[%c6, %c0_40], %83 {strides = array<i32>} : memref<16x128xf32, #tpu.memory_space<vmem>>, vector<1x128xf32>,
    %85 = arith.index_cast %81 : i32 to index
    %c0_41 = arith.constant 0 : index
    %86 = vector.load %arg4[%85, %c0_41] : memref<256x128xf32, #tpu.memory_space<vmem>>, vector<1x128xf32>
    %c6_42 = arith.constant 6 : index
    %c0_43 = arith.constant 0 : index
    %87 = vector.load %arg7[%c6_42, %c0_43] : memref<16x128xf32, #tpu.memory_space<vmem>>, vector<1x128xf32>
    tpu.vector_store %arg7[%c6_42, %c0_43], %86 {strides = array<i32>} : memref<16x128xf32, #tpu.memory_space<vmem>>, vector<1x128xf32>,
    %c7_i32 = arith.constant 7 : i32
    %88 = arith.addi %3, %c7_i32 : i32
    %89 = arith.index_cast %88 : i32 to index
    %90 = memref.load %arg1[%89] : memref<16xi32, #tpu.memory_space<smem>>
    %c7_i32_44 = arith.constant 7 : i32
    %91 = arith.addi %3, %c7_i32_44 : i32
    %92 = arith.index_cast %91 : i32 to index
    %93 = memref.load %arg2[%92] : memref<16xi32, #tpu.memory_space<smem>>
    %94 = arith.index_cast %90 : i32 to index
    %c0_45 = arith.constant 0 : index
    %95 = vector.load %arg4[%94, %c0_45] : memref<256x128xf32, #tpu.memory_space<vmem>>, vector<1x128xf32>
    %c7 = arith.constant 7 : index
    %c0_46 = arith.constant 0 : index
    %96 = vector.load %arg6[%c7, %c0_46] : memref<16x128xf32, #tpu.memory_space<vmem>>, vector<1x128xf32>
    tpu.vector_store %arg6[%c7, %c0_46], %95 {strides = array<i32>} : memref<16x128xf32, #tpu.memory_space<vmem>>, vector<1x128xf32>,
    %97 = arith.index_cast %93 : i32 to index
    %c0_47 = arith.constant 0 : index
    %98 = vector.load %arg4[%97, %c0_47] : memref<256x128xf32, #tpu.memory_space<vmem>>, vector<1x128xf32>
    %c7_48 = arith.constant 7 : index
    %c0_49 = arith.constant 0 : index
    %99 = vector.load %arg7[%c7_48, %c0_49] : memref<16x128xf32, #tpu.memory_space<vmem>>, vector<1x128xf32>
    tpu.vector_store %arg7[%c7_48, %c0_49], %98 {strides = array<i32>} : memref<16x128xf32, #tpu.memory_space<vmem>>, vector<1x128xf32>,
    %c8_i32 = arith.constant 8 : i32
    %100 = arith.addi %3, %c8_i32 : i32
    %101 = arith.index_cast %100 : i32 to index
    %102 = memref.load %arg1[%101] : memref<16xi32, #tpu.memory_space<smem>>
    %c8_i32_50 = arith.constant 8 : i32
    %103 = arith.addi %3, %c8_i32_50 : i32
    %104 = arith.index_cast %103 : i32 to index
    %105 = memref.load %arg2[%104] : memref<16xi32, #tpu.memory_space<smem>>
    %106 = arith.index_cast %102 : i32 to index
    %c0_51 = arith.constant 0 : index
    %107 = vector.load %arg4[%106, %c0_51] : memref<256x128xf32, #tpu.memory_space<vmem>>, vector<1x128xf32>
    %c8 = arith.constant 8 : index
    %c0_52 = arith.constant 0 : index
    %108 = vector.load %arg6[%c8, %c0_52] : memref<16x128xf32, #tpu.memory_space<vmem>>, vector<1x128xf32>
    tpu.vector_store %arg6[%c8, %c0_52], %107 {strides = array<i32>} : memref<16x128xf32, #tpu.memory_space<vmem>>, vector<1x128xf32>,
    %109 = arith.index_cast %105 : i32 to index
    %c0_53 = arith.constant 0 : index
    %110 = vector.load %arg4[%109, %c0_53] : memref<256x128xf32, #tpu.memory_space<vmem>>, vector<1x128xf32>
    %c8_54 = arith.constant 8 : index
    %c0_55 = arith.constant 0 : index
    %111 = vector.load %arg7[%c8_54, %c0_55] : memref<16x128xf32, #tpu.memory_space<vmem>>, vector<1x128xf32>
    tpu.vector_store %arg7[%c8_54, %c0_55], %110 {strides = array<i32>} : memref<16x128xf32, #tpu.memory_space<vmem>>, vector<1x128xf32>,
    %c9_i32 = arith.constant 9 : i32
    %112 = arith.addi %3, %c9_i32 : i32
    %113 = arith.index_cast %112 : i32 to index
    %114 = memref.load %arg1[%113] : memref<16xi32, #tpu.memory_space<smem>>
    %c9_i32_56 = arith.constant 9 : i32
    %115 = arith.addi %3, %c9_i32_56 : i32
    %116 = arith.index_cast %115 : i32 to index
    %117 = memref.load %arg2[%116] : memref<16xi32, #tpu.memory_space<smem>>
    %118 = arith.index_cast %114 : i32 to index
    %c0_57 = arith.constant 0 : index
    %119 = vector.load %arg4[%118, %c0_57] : memref<256x128xf32, #tpu.memory_space<vmem>>, vector<1x128xf32>
    %c9 = arith.constant 9 : index
    %c0_58 = arith.constant 0 : index
    %120 = vector.load %arg6[%c9, %c0_58] : memref<16x128xf32, #tpu.memory_space<vmem>>, vector<1x128xf32>
    tpu.vector_store %arg6[%c9, %c0_58], %119 {strides = array<i32>} : memref<16x128xf32, #tpu.memory_space<vmem>>, vector<1x128xf32>,
    %121 = arith.index_cast %117 : i32 to index
    %c0_59 = arith.constant 0 : index
    %122 = vector.load %arg4[%121, %c0_59] : memref<256x128xf32, #tpu.memory_space<vmem>>, vector<1x128xf32>
    %c9_60 = arith.constant 9 : index
    %c0_61 = arith.constant 0 : index
    %123 = vector.load %arg7[%c9_60, %c0_61] : memref<16x128xf32, #tpu.memory_space<vmem>>, vector<1x128xf32>
    tpu.vector_store %arg7[%c9_60, %c0_61], %122 {strides = array<i32>} : memref<16x128xf32, #tpu.memory_space<vmem>>, vector<1x128xf32>,
    %c10_i32 = arith.constant 10 : i32
    %124 = arith.addi %3, %c10_i32 : i32
    %125 = arith.index_cast %124 : i32 to index
    %126 = memref.load %arg1[%125] : memref<16xi32, #tpu.memory_space<smem>>
    %c10_i32_62 = arith.constant 10 : i32
    %127 = arith.addi %3, %c10_i32_62 : i32
    %128 = arith.index_cast %127 : i32 to index
    %129 = memref.load %arg2[%128] : memref<16xi32, #tpu.memory_space<smem>>
    %130 = arith.index_cast %126 : i32 to index
    %c0_63 = arith.constant 0 : index
    %131 = vector.load %arg4[%130, %c0_63] : memref<256x128xf32, #tpu.memory_space<vmem>>, vector<1x128xf32>
    %c10 = arith.constant 10 : index
    %c0_64 = arith.constant 0 : index
    %132 = vector.load %arg6[%c10, %c0_64] : memref<16x128xf32, #tpu.memory_space<vmem>>, vector<1x128xf32>
    tpu.vector_store %arg6[%c10, %c0_64], %131 {strides = array<i32>} : memref<16x128xf32, #tpu.memory_space<vmem>>, vector<1x128xf32>,
    %133 = arith.index_cast %129 : i32 to index
    %c0_65 = arith.constant 0 : index
    %134 = vector.load %arg4[%133, %c0_65] : memref<256x128xf32, #tpu.memory_space<vmem>>, vector<1x128xf32>
    %c10_66 = arith.constant 10 : index
    %c0_67 = arith.constant 0 : index
    %135 = vector.load %arg7[%c10_66, %c0_67] : memref<16x128xf32, #tpu.memory_space<vmem>>, vector<1x128xf32>
    tpu.vector_store %arg7[%c10_66, %c0_67], %134 {strides = array<i32>} : memref<16x128xf32, #tpu.memory_space<vmem>>, vector<1x128xf32>,
    %c11_i32 = arith.constant 11 : i32
    %136 = arith.addi %3, %c11_i32 : i32
    %137 = arith.index_cast %136 : i32 to index
    %138 = memref.load %arg1[%137] : memref<16xi32, #tpu.memory_space<smem>>
    %c11_i32_68 = arith.constant 11 : i32
    %139 = arith.addi %3, %c11_i32_68 : i32
    %140 = arith.index_cast %139 : i32 to index
    %141 = memref.load %arg2[%140] : memref<16xi32, #tpu.memory_space<smem>>
    %142 = arith.index_cast %138 : i32 to index
    %c0_69 = arith.constant 0 : index
    %143 = vector.load %arg4[%142, %c0_69] : memref<256x128xf32, #tpu.memory_space<vmem>>, vector<1x128xf32>
    %c11 = arith.constant 11 : index
    %c0_70 = arith.constant 0 : index
    %144 = vector.load %arg6[%c11, %c0_70] : memref<16x128xf32, #tpu.memory_space<vmem>>, vector<1x128xf32>
    tpu.vector_store %arg6[%c11, %c0_70], %143 {strides = array<i32>} : memref<16x128xf32, #tpu.memory_space<vmem>>, vector<1x128xf32>,
    %145 = arith.index_cast %141 : i32 to index
    %c0_71 = arith.constant 0 : index
    %146 = vector.load %arg4[%145, %c0_71] : memref<256x128xf32, #tpu.memory_space<vmem>>, vector<1x128xf32>
    %c11_72 = arith.constant 11 : index
    %c0_73 = arith.constant 0 : index
    %147 = vector.load %arg7[%c11_72, %c0_73] : memref<16x128xf32, #tpu.memory_space<vmem>>, vector<1x128xf32>
    tpu.vector_store %arg7[%c11_72, %c0_73], %146 {strides = array<i32>} : memref<16x128xf32, #tpu.memory_space<vmem>>, vector<1x128xf32>,
    %c12_i32 = arith.constant 12 : i32
    %148 = arith.addi %3, %c12_i32 : i32
    %149 = arith.index_cast %148 : i32 to index
    %150 = memref.load %arg1[%149] : memref<16xi32, #tpu.memory_space<smem>>
    %c12_i32_74 = arith.constant 12 : i32
    %151 = arith.addi %3, %c12_i32_74 : i32
    %152 = arith.index_cast %151 : i32 to index
    %153 = memref.load %arg2[%152] : memref<16xi32, #tpu.memory_space<smem>>
    %154 = arith.index_cast %150 : i32 to index
    %c0_75 = arith.constant 0 : index
    %155 = vector.load %arg4[%154, %c0_75] : memref<256x128xf32, #tpu.memory_space<vmem>>, vector<1x128xf32>
    %c12 = arith.constant 12 : index
    %c0_76 = arith.constant 0 : index
    %156 = vector.load %arg6[%c12, %c0_76] : memref<16x128xf32, #tpu.memory_space<vmem>>, vector<1x128xf32>
    tpu.vector_store %arg6[%c12, %c0_76], %155 {strides = array<i32>} : memref<16x128xf32, #tpu.memory_space<vmem>>, vector<1x128xf32>,
    %157 = arith.index_cast %153 : i32 to index
    %c0_77 = arith.constant 0 : index
    %158 = vector.load %arg4[%157, %c0_77] : memref<256x128xf32, #tpu.memory_space<vmem>>, vector<1x128xf32>
    %c12_78 = arith.constant 12 : index
    %c0_79 = arith.constant 0 : index
    %159 = vector.load %arg7[%c12_78, %c0_79] : memref<16x128xf32, #tpu.memory_space<vmem>>, vector<1x128xf32>
    tpu.vector_store %arg7[%c12_78, %c0_79], %158 {strides = array<i32>} : memref<16x128xf32, #tpu.memory_space<vmem>>, vector<1x128xf32>,
    %c13_i32 = arith.constant 13 : i32
    %160 = arith.addi %3, %c13_i32 : i32
    %161 = arith.index_cast %160 : i32 to index
    %162 = memref.load %arg1[%161] : memref<16xi32, #tpu.memory_space<smem>>
    %c13_i32_80 = arith.constant 13 : i32
    %163 = arith.addi %3, %c13_i32_80 : i32
    %164 = arith.index_cast %163 : i32 to index
    %165 = memref.load %arg2[%164] : memref<16xi32, #tpu.memory_space<smem>>
    %166 = arith.index_cast %162 : i32 to index
    %c0_81 = arith.constant 0 : index
    %167 = vector.load %arg4[%166, %c0_81] : memref<256x128xf32, #tpu.memory_space<vmem>>, vector<1x128xf32>
    %c13 = arith.constant 13 : index
    %c0_82 = arith.constant 0 : index
    %168 = vector.load %arg6[%c13, %c0_82] : memref<16x128xf32, #tpu.memory_space<vmem>>, vector<1x128xf32>
    tpu.vector_store %arg6[%c13, %c0_82], %167 {strides = array<i32>} : memref<16x128xf32, #tpu.memory_space<vmem>>, vector<1x128xf32>,
    %169 = arith.index_cast %165 : i32 to index
    %c0_83 = arith.constant 0 : index
    %170 = vector.load %arg4[%169, %c0_83] : memref<256x128xf32, #tpu.memory_space<vmem>>, vector<1x128xf32>
    %c13_84 = arith.constant 13 : index
    %c0_85 = arith.constant 0 : index
    %171 = vector.load %arg7[%c13_84, %c0_85] : memref<16x128xf32, #tpu.memory_space<vmem>>, vector<1x128xf32>
    tpu.vector_store %arg7[%c13_84, %c0_85], %170 {strides = array<i32>} : memref<16x128xf32, #tpu.memory_space<vmem>>, vector<1x128xf32>,
    %c14_i32 = arith.constant 14 : i32
    %172 = arith.addi %3, %c14_i32 : i32
    %173 = arith.index_cast %172 : i32 to index
    %174 = memref.load %arg1[%173] : memref<16xi32, #tpu.memory_space<smem>>
    %c14_i32_86 = arith.constant 14 : i32
    %175 = arith.addi %3, %c14_i32_86 : i32
    %176 = arith.index_cast %175 : i32 to index
    %177 = memref.load %arg2[%176] : memref<16xi32, #tpu.memory_space<smem>>
    %178 = arith.index_cast %174 : i32 to index
    %c0_87 = arith.constant 0 : index
    %179 = vector.load %arg4[%178, %c0_87] : memref<256x128xf32, #tpu.memory_space<vmem>>, vector<1x128xf32>
    %c14 = arith.constant 14 : index
    %c0_88 = arith.constant 0 : index
    %180 = vector.load %arg6[%c14, %c0_88] : memref<16x128xf32, #tpu.memory_space<vmem>>, vector<1x128xf32>
    tpu.vector_store %arg6[%c14, %c0_88], %179 {strides = array<i32>} : memref<16x128xf32, #tpu.memory_space<vmem>>, vector<1x128xf32>,
    %181 = arith.index_cast %177 : i32 to index
    %c0_89 = arith.constant 0 : index
    %182 = vector.load %arg4[%181, %c0_89] : memref<256x128xf32, #tpu.memory_space<vmem>>, vector<1x128xf32>
    %c14_90 = arith.constant 14 : index
    %c0_91 = arith.constant 0 : index
    %183 = vector.load %arg7[%c14_90, %c0_91] : memref<16x128xf32, #tpu.memory_space<vmem>>, vector<1x128xf32>
    tpu.vector_store %arg7[%c14_90, %c0_91], %182 {strides = array<i32>} : memref<16x128xf32, #tpu.memory_space<vmem>>, vector<1x128xf32>,
    %c15_i32 = arith.constant 15 : i32
    %184 = arith.addi %3, %c15_i32 : i32
    %185 = arith.index_cast %184 : i32 to index
    %186 = memref.load %arg1[%185] : memref<16xi32, #tpu.memory_space<smem>>
    %c15_i32_92 = arith.constant 15 : i32
    %187 = arith.addi %3, %c15_i32_92 : i32
    %188 = arith.index_cast %187 : i32 to index
    %189 = memref.load %arg2[%188] : memref<16xi32, #tpu.memory_space<smem>>
    %190 = arith.index_cast %186 : i32 to index
    %c0_93 = arith.constant 0 : index
    %191 = vector.load %arg4[%190, %c0_93] : memref<256x128xf32, #tpu.memory_space<vmem>>, vector<1x128xf32>
    %c15 = arith.constant 15 : index
    %c0_94 = arith.constant 0 : index
    %192 = vector.load %arg6[%c15, %c0_94] : memref<16x128xf32, #tpu.memory_space<vmem>>, vector<1x128xf32>
    tpu.vector_store %arg6[%c15, %c0_94], %191 {strides = array<i32>} : memref<16x128xf32, #tpu.memory_space<vmem>>, vector<1x128xf32>,
    %193 = arith.index_cast %189 : i32 to index
    %c0_95 = arith.constant 0 : index
    %194 = vector.load %arg4[%193, %c0_95] : memref<256x128xf32, #tpu.memory_space<vmem>>, vector<1x128xf32>
    %c15_96 = arith.constant 15 : index
    %c0_97 = arith.constant 0 : index
    %195 = vector.load %arg7[%c15_96, %c0_97] : memref<16x128xf32, #tpu.memory_space<vmem>>, vector<1x128xf32>
    tpu.vector_store %arg7[%c15_96, %c0_97], %194 {strides = array<i32>} : memref<16x128xf32, #tpu.memory_space<vmem>>, vector<1x128xf32>,
    %c0_98 = arith.constant 0 : index
    %c0_99 = arith.constant 0 : index
    %196 = vector.load %arg6[%c0_98, %c0_99] : memref<16x128xf32, #tpu.memory_space<vmem>>, vector<16x128xf32>
    %c0_100 = arith.constant 0 : index
    %c0_101 = arith.constant 0 : index
    %197 = vector.load %arg7[%c0_100, %c0_101] : memref<16x128xf32, #tpu.memory_space<vmem>>, vector<16x128xf32>
    %198 = arith.mulf %196, %197 : vector<16x128xf32>
    %cst = arith.constant dense<0.000000e+00> : vector<16xf32>
    %199 = vector.multi_reduction <add>, %198, %cst [1] : vector<16x128xf32> to vector<16xf32>
    %200 = vector.shape_cast %199 : vector<16xf32> to vector<16x1xf32>
    %c0_102 = arith.constant 0 : index
    %c0_103 = arith.constant 0 : index
    %201 = vector.load %arg3[%c0_102, %c0_103] : memref<16x1xf32, #tpu.memory_space<vmem>>, vector<16x1xf32>
    %202 = tpu.iota {dimensions = array<i32: 0>} : vector<16x1xi32>
    %203 = vector.broadcast %3 : i32 to vector<16x1xi32>
    %204 = arith.addi %202, %203 : vector<16x1xi32>
    %c0_104 = arith.constant 0 : index
    %c0_105 = arith.constant 0 : index
    %205 = vector.load %arg8[%c0_104, %c0_105] : memref<1x1xf32, #tpu.memory_space<vmem>>, vector<1x1xf32>
    %c16_i32_106 = arith.constant 16 : i32
    %206 = vector.broadcast %c16_i32_106 : i32 to vector<16x1xi32>
    %207 = arith.cmpi slt, %204, %206 : vector<16x1xi32>
    %cst_107 = arith.constant 0.000000e+00 : f32
    %208 = vector.broadcast %cst_107 : f32 to vector<16x1xf32>
    %209 = arith.maximumf %200, %208 : vector<16x1xf32>
    %210 = arith.mulf %200, %201 : vector<16x1xf32>
    %211 = arith.subf %209, %210 : vector<16x1xf32>
    %212 = math.absf %200 : vector<16x1xf32>
    %cst_108 = arith.constant 0.000000e+00 : f32
    %213 = vector.broadcast %cst_108 : f32 to vector<16x1xf32>
    %214 = arith.subf %213, %212 : vector<16x1xf32>
    %215 = math.exp %214 : vector<16x1xf32>
    %216 = math.log1p %215 : vector<16x1xf32>
    %217 = arith.addf %211, %216 : vector<16x1xf32>
    %cst_109 = arith.constant 0.000000e+00 : f32
    %218 = vector.broadcast %cst_109 : f32 to vector<16x1xf32>
    %219 = arith.select %207, %217, %218 : vector<16x1xi1>, vector<16x1xf32>
    %cst_110 = arith.constant dense<0.000000e+00> : vector<1xf32>
    %220 = vector.multi_reduction <add>, %219, %cst_110 [0] : vector<16x1xf32> to vector<1xf32>
    %221 = vector.shape_cast %220 : vector<1xf32> to vector<1x1xf32>
    %222 = arith.addf %205, %221 : vector<1x1xf32>
    %c0_111 = arith.constant 0 : index
    %c0_112 = arith.constant 0 : index
    %223 = vector.load %arg8[%c0_111, %c0_112] : memref<1x1xf32, #tpu.memory_space<vmem>>, vector<1x1xf32>
    tpu.vector_store %arg8[%c0_111, %c0_112], %222 {strides = array<i32>} : memref<1x1xf32, #tpu.memory_space<vmem>>, vector<1x1xf32>,
    %c0_i32_113 = arith.constant 0 : i32
    %224 = arith.cmpi eq, %arg0, %c0_i32_113 : i32
    %225 = arith.extui %224 : i1 to i32
    %c0_i32_114 = arith.constant 0 : i32
    %226 = arith.cmpi ne, %225, %c0_i32_114 : i32
    scf.if %226 {
      %c0_115 = arith.constant 0 : index
      %c0_116 = arith.constant 0 : index
      %227 = vector.load %arg8[%c0_115, %c0_116] : memref<1x1xf32, #tpu.memory_space<vmem>>, vector<1x1xf32>
      %c0_117 = arith.constant 0 : index
      %c0_118 = arith.constant 0 : index
      %228 = vector.load %arg5[%c0_117, %c0_118] : memref<1x1xf32, #tpu.memory_space<vmem>>, vector<1x1xf32>
      tpu.vector_store %arg5[%c0_117, %c0_118], %227 {strides = array<i32>} : memref<1x1xf32, #tpu.memory_space<vmem>>, vector<1x1xf32>,
    } else {
    }
    return
  }
  func.func @transform_0(%arg0: i32, %arg1: memref<16xi32, #tpu.memory_space<smem>>, %arg2: memref<16xi32, #tpu.memory_space<smem>>) -> (i32, i32) {
    %c0_i32 = arith.constant 0 : i32
    %c0_i32_0 = arith.constant 0 : i32
    return %arg0, %c0_i32 : i32, i32
  }
  func.func @transform_1(%arg0: i32, %arg1: memref<16xi32, #tpu.memory_space<smem>>, %arg2: memref<16xi32, #tpu.memory_space<smem>>) -> (i32, i32) {
    %c0_i32 = arith.constant 0 : i32
    %c0_i32_0 = arith.constant 0 : i32
    %c0_i32_1 = arith.constant 0 : i32
    return %c0_i32, %c0_i32_0 : i32, i32
  }
  func.func @transform_2(%arg0: i32, %arg1: memref<16xi32, #tpu.memory_space<smem>>, %arg2: memref<16xi32, #tpu.memory_space<smem>>) -> (i32, i32) {
    %c0_i32 = arith.constant 0 : i32
    %c0_i32_0 = arith.constant 0 : i32
    %c0_i32_1 = arith.constant 0 : i32
    return %c0_i32, %c0_i32_0 : i32, i32
  }
}

</mosaic_0001>

<llo_original>
// kernel: tpu_custom_call.1
$region0: #{tpu_custom_call.1}
  #allocation0 [shape = 'u32[]', space=smem, size = 0x4, offset = 0x4, fixed_abs, tag = 'smem constant byte address 0x4 - core index']
  #allocation1 [shape = 'u32[72,128]{1,0:T(1,128)}', space=vmem, size = 0x9000, scoped, tag = 'internal scratch']
  #allocation2 [shape = 'f32[16,128]{1,0:T(8,128)}', space=vmem, size = 0x2000, scoped, tag = 'scratch operand']
  #allocation3 [shape = 'f32[16,128]{1,0:T(8,128)}', space=vmem, size = 0x2000, scoped, tag = 'scratch operand']
  #allocation4 [shape = 'f32[1,1]{1,0:T(1,128)}', space=vmem, size = 0x200, scoped, tag = 'scratch operand']
  #allocation5 [shape = 's32[1]{0}', space=sflag, size = 0x4, scoped, tag = 'scoped memory for tpu_custom_call.1']
  #allocation6 [shape = 'u8[512]{0}', space=smem, size = 0x200, scoped, tag = 'prefetched SMEM operand 0']
  #allocation7 [shape = 'u8[512]{0}', space=smem, size = 0x200, scoped, tag = 'prefetched SMEM operand 1']
  %s0 = inlined_call_operand.vmem [shape: s32[16], index: 0, kind: input, shape index: {}]
  %s1 = inlined_call_operand.vmem [shape: s32[16], index: 1, kind: input, shape index: {}]
  %s2 = inlined_call_operand.vmem [shape: f32[16,1], index: 2, kind: input, shape index: {}]
  %s3 = inlined_call_operand.hbm [shape: f32[256,128], index: 3, kind: input, shape index: {}]
  %s4 = inlined_call_operand.hbm [shape: f32[1,1], index: 4, kind: output, shape index: {}]
  %s5 = sld [smem:[#allocation0]]
  $region30: #{tpu_custom_call.1} parent=0
    _
  %s7 = ssub.s32 1, %s5
  %s8 = scalar_select 0, %s7, %s5
  %s10 = sshll.u32 %s0, 4
  %s11 = int_to_ptr.vmem [resolvable:$true] %s10
  %13 = dma.vmem_to_smem %s11, 16, [#allocation6], [#allocation5]
  %s15 = sshll.u32 %s1, 4
  %s16 = int_to_ptr.vmem [resolvable:$true] %s15
  %18 = dma.vmem_to_smem %s16, 16, [#allocation7], [#allocation5]
  %20 = dma.done [#allocation5], 32
  %21 = sfence
  $region1: #{tpu_custom_call.1} parent=0
    #allocation8 [shape = 'u8[131072]{0}', space=vmem, size = 0x20000, scoped, tag = 'input window, operand 3, single buffered']
    #allocation9 [shape = 's32[1]{0}', space=sflag, size = 0x4, scoped, tag = 'scoped memory for tpu_custom_call.1']
    #allocation10 [shape = 's32[1]{0}', space=sflag, size = 0x4, scoped, tag = 'scoped memory for tpu_custom_call.1']
    #allocation11 [shape = 'u8[512]{0}', space=vmem, size = 0x400, scoped, tag = 'output window, operand 0, single buffered']
    %22 = vsyncpa [#allocation9], 0
    %23 = vsyncpa [#allocation10], 0
    // Predicated region
    $region2: #{tpu_custom_call.1} parent=1 // pred_check
      _
    $region3: #{tpu_custom_call.1} parent=1 // pred_check_branch
      %25 = sbr.rel (0) target = $region5
    $region4: #{tpu_custom_call.1} parent=1 // pred_region
      _
    $region5: #{tpu_custom_call.1} parent=1 // pred_fallthru
      _
    // Predicated region
    $region6: #{tpu_custom_call.1} parent=1 // pred_check
      _
    $region7: #{tpu_custom_call.1} parent=1 // pred_check_branch
      %27 = sbr.rel (0) target = $region9
    $region8: #{tpu_custom_call.1} parent=1 // pred_region
      %29 = vsyncadd [#allocation9], 0
      %s30 = sshll.u32 %s3, 4
      %s31 = int_to_ptr.hbm [resolvable:$true] %s30
      %s32 = sshll.u32 [#allocation8], 4
      %s33 = int_to_ptr.vmem [resolvable:$true] %s32
      %38 = dma.hbm_to_vmem [thread:$0]  %s31, 4096, %s33, [#allocation9], 128, 128, 8
    $region9: #{tpu_custom_call.1} parent=1 // pred_fallthru
      _
    // Predicated region
    $region10: #{tpu_custom_call.1} parent=1 // pred_check
      _
    $region11: #{tpu_custom_call.1} parent=1 // pred_check_branch
      %40 = sbr.rel (0) target = $region13
    $region12: #{tpu_custom_call.1} parent=1 // pred_region
      %42 = dma.done [#allocation9], 4096
    $region13: #{tpu_custom_call.1} parent=1 // pred_fallthru
      _
    %p43 = scmp.eq.s32.totalorder 0, 0
    // Predicated region
    $region14: #{tpu_custom_call.1} parent=1 // pred_check
      %p44 = pneg %p43
    $region15: #{tpu_custom_call.1} parent=1 // pred_check_branch
      %46 = sbr.rel (%p44) target = $region17
    $region16: #{tpu_custom_call.1} parent=1 // pred_region
      %vm47 = vcmask 0
      %48 = vst.msk [vmem:[#allocation4] sm:$0x1] %vm47, 0.0
    $region17: #{tpu_custom_call.1} parent=1 // pred_fallthru
      _
    %s49 = smul.u32 0, 16
    %s50 = sld [smem:[#allocation6 + %s49]]
    %s51 = sld [smem:[#allocation7 + %s49]]
    %s52 = scalar_lea.vmem [#allocation8], %s50
    %v53 = vld [vmem:[%s52] sm:$0x1]
    %54 = vst [vmem:[#allocation2] sm:$0x1] %v53
    %s55 = scalar_lea.vmem [#allocation8], %s51
    %v56 = vld [vmem:[%s55] sm:$0x1]
    %57 = vst [vmem:[#allocation3] sm:$0x1] %v56
    %s58 = sadd.s32 %s49, 1
    %s59 = sld [smem:[#allocation6 + %s58]]
    %s60 = sld [smem:[#allocation7 + %s58]]
    %s61 = scalar_lea.vmem [#allocation8], %s59
    %v62 = vld [vmem:[%s61] sm:$0x1]
    %63 = vst [vmem:[#allocation2 + $0x1] sm:$0x1] %v62
    %s64 = scalar_lea.vmem [#allocation8], %s60
    %v65 = vld [vmem:[%s64] sm:$0x1]
    %66 = vst [vmem:[#allocation3 + $0x1] sm:$0x1] %v65
    %s67 = sadd.s32 %s49, 2
    %s68 = sld [smem:[#allocation6 + %s67]]
    %s69 = sld [smem:[#allocation7 + %s67]]
    %s70 = scalar_lea.vmem [#allocation8], %s68
    %v71 = vld [vmem:[%s70] sm:$0x1]
    %72 = vst [vmem:[#allocation2 + $0x2] sm:$0x1] %v71
    %s73 = scalar_lea.vmem [#allocation8], %s69
    %v74 = vld [vmem:[%s73] sm:$0x1]
    %75 = vst [vmem:[#allocation3 + $0x2] sm:$0x1] %v74
    %s76 = sadd.s32 %s49, 3
    %s77 = sld [smem:[#allocation6 + %s76]]
    %s78 = sld [smem:[#allocation7 + %s76]]
    %s79 = scalar_lea.vmem [#allocation8], %s77
    %v80 = vld [vmem:[%s79] sm:$0x1]
    %81 = vst [vmem:[#allocation2 + $0x3] sm:$0x1] %v80
    %s82 = scalar_lea.vmem [#allocation8], %s78
    %v83 = vld [vmem:[%s82] sm:$0x1]
    %84 = vst [vmem:[#allocation3 + $0x3] sm:$0x1] %v83
    %s85 = sadd.s32 %s49, 4
    %s86 = sld [smem:[#allocation6 + %s85]]
    %s87 = sld [smem:[#allocation7 + %s85]]
    %s88 = scalar_lea.vmem [#allocation8], %s86
    %v89 = vld [vmem:[%s88] sm:$0x1]
    %90 = vst [vmem:[#allocation2 + $0x4] sm:$0x1] %v89
    %s91 = scalar_lea.vmem [#allocation8], %s87
    %v92 = vld [vmem:[%s91] sm:$0x1]
    %93 = vst [vmem:[#allocation3 + $0x4] sm:$0x1] %v92
    %s94 = sadd.s32 %s49, 5
    %s95 = sld [smem:[#allocation6 + %s94]]
    %s96 = sld [smem:[#allocation7 + %s94]]
    %s97 = scalar_lea.vmem [#allocation8], %s95
    %v98 = vld [vmem:[%s97] sm:$0x1]
    %99 = vst [vmem:[#allocation2 + $0x5] sm:$0x1] %v98
    %s100 = scalar_lea.vmem [#allocation8], %s96
    %v101 = vld [vmem:[%s100] sm:$0x1]
    %102 = vst [vmem:[#allocation3 + $0x5] sm:$0x1] %v101
    %s103 = sadd.s32 %s49, 6
    %s104 = sld [smem:[#allocation6 + %s103]]
    %s105 = sld [smem:[#allocation7 + %s103]]
    %s106 = scalar_lea.vmem [#allocation8], %s104
    %v107 = vld [vmem:[%s106] sm:$0x1]
    %108 = vst [vmem:[#allocation2 + $0x6] sm:$0x1] %v107
    %s109 = scalar_lea.vmem [#allocation8], %s105
    %v110 = vld [vmem:[%s109] sm:$0x1]
    %111 = vst [vmem:[#allocation3 + $0x6] sm:$0x1] %v110
    %s112 = sadd.s32 %s49, 7
    %s113 = sld [smem:[#allocation6 + %s112]]
    %s114 = sld [smem:[#allocation7 + %s112]]
    %s115 = scalar_lea.vmem [#allocation8], %s113
    %v116 = vld [vmem:[%s115] sm:$0x1]
    %117 = vst [vmem:[#allocation2 + $0x7] sm:$0x1] %v116
    %s118 = scalar_lea.vmem [#allocation8], %s114
    %v119 = vld [vmem:[%s118] sm:$0x1]
    %120 = vst [vmem:[#allocation3 + $0x7] sm:$0x1] %v119
    %s121 = sadd.s32 %s49, 8
    %s122 = sld [smem:[#allocation6 + %s121]]
    %s123 = sld [smem:[#allocation7 + %s121]]
    %s124 = scalar_lea.vmem [#allocation8], %s122
    %v125 = vld [vmem:[%s124] sm:$0x1]
    %126 = vst [vmem:[#allocation2 + $0x8] sm:$0x1] %v125
    %s127 = scalar_lea.vmem [#allocation8], %s123
    %v128 = vld [vmem:[%s127] sm:$0x1]
    %129 = vst [vmem:[#allocation3 + $0x8] sm:$0x1] %v128
    %s130 = sadd.s32 %s49, 9
    %s131 = sld [smem:[#allocation6 + %s130]]
    %s132 = sld [smem:[#allocation7 + %s130]]
    %s133 = scalar_lea.vmem [#allocation8], %s131
    %v134 = vld [vmem:[%s133] sm:$0x1]
    %135 = vst [vmem:[#allocation2 + $0x9] sm:$0x1] %v134
    %s136 = scalar_lea.vmem [#allocation8], %s132
    %v137 = vld [vmem:[%s136] sm:$0x1]
    %138 = vst [vmem:[#allocation3 + $0x9] sm:$0x1] %v137
    %s139 = sadd.s32 %s49, 10
    %s140 = sld [smem:[#allocation6 + %s139]]
    %s141 = sld [smem:[#allocation7 + %s139]]
    %s142 = scalar_lea.vmem [#allocation8], %s140
    %v143 = vld [vmem:[%s142] sm:$0x1]
    %144 = vst [vmem:[#allocation2 + $0xa] sm:$0x1] %v143
    %s145 = scalar_lea.vmem [#allocation8], %s141
    %v146 = vld [vmem:[%s145] sm:$0x1]
    %147 = vst [vmem:[#allocation3 + $0xa] sm:$0x1] %v146
    %s148 = sadd.s32 %s49, 11
    %s149 = sld [smem:[#allocation6 + %s148]]
    %s150 = sld [smem:[#allocation7 + %s148]]
    %s151 = scalar_lea.vmem [#allocation8], %s149
    %v152 = vld [vmem:[%s151] sm:$0x1]
    %153 = vst [vmem:[#allocation2 + $0xb] sm:$0x1] %v152
    %s154 = scalar_lea.vmem [#allocation8], %s150
    %v155 = vld [vmem:[%s154] sm:$0x1]
    %156 = vst [vmem:[#allocation3 + $0xb] sm:$0x1] %v155
    %s157 = sadd.s32 %s49, 12
    %s158 = sld [smem:[#allocation6 + %s157]]
    %s159 = sld [smem:[#allocation7 + %s157]]
    %s160 = scalar_lea.vmem [#allocation8], %s158
    %v161 = vld [vmem:[%s160] sm:$0x1]
    %162 = vst [vmem:[#allocation2 + $0xc] sm:$0x1] %v161
    %s163 = scalar_lea.vmem [#allocation8], %s159
    %v164 = vld [vmem:[%s163] sm:$0x1]
    %165 = vst [vmem:[#allocation3 + $0xc] sm:$0x1] %v164
    %s166 = sadd.s32 %s49, 13
    %s167 = sld [smem:[#allocation6 + %s166]]
    %s168 = sld [smem:[#allocation7 + %s166]]
    %s169 = scalar_lea.vmem [#allocation8], %s167
    %v170 = vld [vmem:[%s169] sm:$0x1]
    %171 = vst [vmem:[#allocation2 + $0xd] sm:$0x1] %v170
    %s172 = scalar_lea.vmem [#allocation8], %s168
    %v173 = vld [vmem:[%s172] sm:$0x1]
    %174 = vst [vmem:[#allocation3 + $0xd] sm:$0x1] %v173
    %s175 = sadd.s32 %s49, 14
    %s176 = sld [smem:[#allocation6 + %s175]]
    %s177 = sld [smem:[#allocation7 + %s175]]
    %s178 = scalar_lea.vmem [#allocation8], %s176
    %v179 = vld [vmem:[%s178] sm:$0x1]
    %180 = vst [vmem:[#allocation2 + $0xe] sm:$0x1] %v179
    %s181 = scalar_lea.vmem [#allocation8], %s177
    %v182 = vld [vmem:[%s181] sm:$0x1]
    %183 = vst [vmem:[#allocation3 + $0xe] sm:$0x1] %v182
    %s184 = sadd.s32 %s49, 15
    %s185 = sld [smem:[#allocation6 + %s184]]
    %s186 = sld [smem:[#allocation7 + %s184]]
    %s187 = scalar_lea.vmem [#allocation8], %s185
    %v188 = vld [vmem:[%s187] sm:$0x1]
    %189 = vst [vmem:[#allocation2 + $0xf] sm:$0x1] %v188
    %s190 = scalar_lea.vmem [#allocation8], %s186
    %v191 = vld [vmem:[%s190] sm:$0x1]
    %192 = vst [vmem:[#allocation3 + $0xf] sm:$0x1] %v191
    %v193 = vld [vmem:[#allocation2] sm:$0xff]
    %v194 = vld [vmem:[#allocation2 + $0x8] sm:$0xff]
    %v195 = vld [vmem:[#allocation3] sm:$0xff]
    %v196 = vld [vmem:[#allocation3 + $0x8] sm:$0xff]
    %v197 = vmul.f32 %v193, %v195
    %v198 = vmul.f32 %v194, %v196
    %199 = vadd.xlane.f32.xlu0 %v197
    %v200 = vpop.xlane.xlu0 %199
    %201 = vadd.xlane.f32.xlu0 %v198
    %v202 = vpop.xlane.xlu0 %201
    %v203 = vld [vmem:[%s2] sm:$0xff]
    %v204 = vld [vmem:[%s2 + $0x8] sm:$0xff]
    %v205 = vlaneseq
    %v206 = vshrl.u32 %v205, 7
    %v207 = vadd.s32 %v206, 8
    %v208 = vstv %s49
    %v209 = vadd.s32 %v206, %v208
    %v210 = vadd.s32 %v207, %v208
    %v211 = vld [vmem:[#allocation4] sm:$0x1]
    %vm212 = vcmp.lt.s32.totalorder %v209, 16
    %vm213 = vcmp.lt.s32.totalorder %v210, 16
    %v214 = vmax.f32 %v200, 0.0
    %v215 = vmax.f32 %v202, 0.0
    %v216 = vmul.f32 %v200, %v203
    %v217 = vmul.f32 %v202, %v204
    %v218 = vsub.f32 %v214, %v216
    %v219 = vsub.f32 %v215, %v217
    %v220 = vand.u32 2147483647, %v200
    %v221 = vand.u32 2147483647, %v202
    %v222 = vsub.f32 0.0, %v220
    %v223 = vsub.f32 0.0, %v221
    %v224 = vmul.f32 %v222, 1.442695
    %v225 = vpow.pop %v224
    %v226 = vmul.f32 %v223, 1.442695
    %v227 = vpow.pop %v226
    %v228 = vadd.f32 %v225, 1.0
    %v229 = vlog2.pop %v228
    %v230 = vmul.f32 %v229, 0.6931472
    %v231 = vmul.f32 -0.5, %v225
    %v232 = vadd.f32 %v231, 1.0
    %v233 = vmul.f32 %v232, %v225
    %v234 = vand.u32 2147483647, %v225
    %vm235 = vcmp.lt.f32.partialorder %v234, 0.0004427343
    %v236 = vsel %vm235, %v233, %v230
    %v237 = vadd.f32 %v227, 1.0
    %v238 = vlog2.pop %v237
    %v239 = vmul.f32 %v238, 0.6931472
    %v240 = vmul.f32 -0.5, %v227
    %v241 = vadd.f32 %v240, 1.0
    %v242 = vmul.f32 %v241, %v227
    %v243 = vand.u32 2147483647, %v227
    %vm244 = vcmp.lt.f32.partialorder %v243, 0.0004427343
    %v245 = vsel %vm244, %v242, %v239
    %v246 = vadd.f32 %v218, %v236
    %v247 = vadd.f32 %v219, %v245
    %v248 = vsel %vm212, %v246, 0.0
    %v249 = vsel %vm213, %v247, 0.0
    %vm250 = vcmask 7168
    %v251 = vsel %vm250, %v248, 0.0
    %v252 = vsel %vm250, %v249, 0.0
    %v253 = vadd.f32 %v251, %v252
    %v254 = vrot.slane %v253, 4
    %v255 = vadd.f32 %v253, %v254
    %v256 = vrot.slane %v255, 2
    %v257 = vadd.f32 %v255, %v256
    %v258 = vrot.slane %v257, 1
    %v259 = vadd.f32 %v257, %v258
    %v260 = vadd.f32 %v211, %v259
    %vm261 = vcmask 0
    %262 = vst.msk [vmem:[#allocation4] sm:$0x1] %vm261, %v260
    // Predicated region
    $region18: #{tpu_custom_call.1} parent=1 // pred_check
      %p263 = pneg %p43
    $region19: #{tpu_custom_call.1} parent=1 // pred_check_branch
      %265 = sbr.rel (%p263) target = $region21
    $region20: #{tpu_custom_call.1} parent=1 // pred_region
      %v266 = vld [vmem:[#allocation4] sm:$0x1]
      %267 = vst.msk [vmem:[#allocation11] sm:$0x1] %vm261, %v266
    $region21: #{tpu_custom_call.1} parent=1 // pred_fallthru
      _
    // Predicated region
    $region22: #{tpu_custom_call.1} parent=1 // pred_check
      _
    $region23: #{tpu_custom_call.1} parent=1 // pred_check_branch
      %269 = sbr.rel (0) target = $region25
    $region24: #{tpu_custom_call.1} parent=1 // pred_region
      %271 = vsyncadd [#allocation10], 0
      %s273 = sshll.u32 [#allocation11], 4
      %s274 = int_to_ptr.vmem [resolvable:$true] %s273
      %s275 = sshll.u32 %s4, 4
      %s276 = int_to_ptr.hbm [resolvable:$true] %s275
      %278 = dma.vmem_to_hbm [thread:$0]  %s274, 16, %s276, [#allocation10]
    $region25: #{tpu_custom_call.1} parent=1 // pred_fallthru
      _
    // Predicated region
    $region26: #{tpu_custom_call.1} parent=1 // pred_check
      _
    $region27: #{tpu_custom_call.1} parent=1 // pred_check_branch
      %280 = sbr.rel (0) target = $region29
    $region28: #{tpu_custom_call.1} parent=1 // pred_region
      %282 = dma.done [#allocation10], 16
    $region29: #{tpu_custom_call.1} parent=1 // pred_fallthru
      _
    %283 = vsyncpa [#allocation9], 1
    %284 = vsyncpa [#allocation10], 1

</llo_original>
